<compile_context>
chip_gen: v7x
topology: tpu7x:2x2x1
jax: 0.10.0
libtpu: 0.0.40
codegen_flags: <defaults>
</compile_context>

<pallas_src>
import functools

import jax
import jax.numpy as jnp
from jax.experimental import pallas as pl
from jax.experimental.pallas import tpu as pltpu


def _vgg_block_kernel(x_ref, wmask_ref, *wb_refs_and_out, layer_meta):
    """Fused Conv+ReLU stack for one batch element.

    Activations stay resident in channels-first (C, H*W) lane-dense layout.
    Each conv layer = build im2col slab (k*k*Cin, H*W) from flat lane shifts,
    then a single MXU dot (Cout, k*k*Cin) @ (k*k*Cin, H*W), + bias, + ReLU.
    """
    o_ref = wb_refs_and_out[-1]
    wb_refs = wb_refs_and_out[:-1]
    wmask = wmask_ref[...]                         # (k, hw) row-wrap masks, one per kw tap
    act = x_ref[0].astype(jnp.float32)             # (Cin0, H*W) for this batch element

    for li, m in enumerate(layer_meta):
        w_ref = wb_refs[2 * li]                    # (Cout, k*k*Cin)
        b_ref = wb_refs[2 * li + 1]                # (Cout, 1)
        cin, cout, k, s, pad = m['cin'], m['cout'], m['k'], m['s'], m['pad']
        h_in, w_in, h_out, w_out = m['h_in'], m['w_in'], m['h_out'], m['w_out']
        hw_out = h_out * w_out

        cols = []
        if s == 1 and h_out == h_in and w_out == w_in:
            # Same-size layer (odd k, stride 1): every (dh, dw) tap is a pure flat
            # lane shift of the (C, H*W) activation.  Zero-extend once along lanes
            # (gives the top/bottom zero padding for free) and mask row wrap-around
            # with the precomputed per-kw-tap lane mask.  No spatial reshapes at all.
            hw = h_in * w_in
            assert wmask.shape == (k, hw)
            kpad = pad * w_in + pad                # max |flat offset|
            if kpad > 0:
                zp = jnp.zeros((cin, kpad), jnp.float32)
                act_ext = jnp.concatenate([zp, act, zp], axis=1)   # (cin, hw + 2*kpad)
            else:
                act_ext = act
            for dh in range(k):
                for dw in range(k):
                    off = (dh - pad) * w_in + (dw - pad)
                    patch = jax.lax.slice(act_ext, (0, kpad + off),
                                          (cin, kpad + off + hw))   # flat shift
                    cols.append(patch * wmask[dw:dw + 1, :])
        else:
            # Strided (or even-kernel) layer: pad spatially in VMEM and take
            # strided windows.  Only traced when stride != 1 (first layer).
            act_sp = act.reshape(cin, h_in, w_in)
            if pad > 0:
                zr = jnp.zeros((cin, pad, w_in), jnp.float32)
                zc = jnp.zeros((cin, h_in + 2 * pad, pad), jnp.float32)
                act_sp = jnp.concatenate([zr, act_sp, zr], axis=1)
                act_sp = jnp.concatenate([zc, act_sp, zc], axis=2)
            for dh in range(k):
                for dw in range(k):
                    patch = jax.lax.slice(
                        act_sp, (0, dh, dw),
                        (cin, dh + (h_out - 1) * s + 1, dw + (w_out - 1) * s + 1),
                        (1, s, s))
                    cols.append(patch.reshape(cin, hw_out))

        col = jnp.concatenate(cols, axis=0)        # (k*k*cin, hw_out) im2col slab
        acc = jnp.dot(w_ref[...], col,
                      preferred_element_type=jnp.float32)           # (cout, hw_out)
        acc = acc + b_ref[...]                     # bias broadcast over lanes
        act = jnp.maximum(acc, 0.0)                # ReLU

    o_ref[0] = act.astype(o_ref.dtype)             # lane-dense (Cout, H*W) store


def vgg_block_forward(x_nchw, layers):
    """Fused VGGBlock forward. x_nchw: (N, Cin, H, W); layers: [(w OIHW, b, stride)]."""
    n, cin0, h0, w0 = x_nchw.shape

    # Static per-layer metadata.
    metas = []
    cin, h_in, w_in = cin0, h0, w0
    for (wt, b, s) in layers:
        cout, cin_w, kh, kw = wt.shape
        assert cin_w == cin and kh == kw
        pad = kh // 2
        h_out = (h_in + 2 * pad - kh) // s + 1
        w_out = (w_in + 2 * pad - kw) // s + 1
        metas.append(dict(cin=cin, cout=cout, k=kh, s=s, pad=pad,
                          h_in=h_in, w_in=w_in, h_out=h_out, w_out=w_out))
        cin, h_in, w_in = cout, h_out, w_out
    cout_last, h_last, w_last = cin, h_in, w_in
    hw_last = h_last * w_last

    # All stride-1 layers share the layer-0 output spatial dims -> one wrap mask.
    k0, pad0 = metas[0]['k'], metas[0]['pad']
    h_f, w_f = metas[0]['h_out'], metas[0]['w_out']
    hw_f = h_f * w_f
    ww = jnp.arange(hw_f, dtype=jnp.int32) % w_f
    wmask = jnp.stack(
        [((ww + (dw - pad0) >= 0) & (ww + (dw - pad0) < w_f)).astype(jnp.float32)
         for dw in range(k0)], axis=0)                              # (k, hw_f)

    # Lane-dense operands: x as (N, Cin, H*W); weights as (Cout, k*k*Cin); bias (Cout, 1).
    x_flat = x_nchw.reshape(n, cin0, h0 * w0)
    operands = [x_flat, wmask]
    in_specs = [
        pl.BlockSpec((1, cin0, h0 * w0), lambda i: (i, 0, 0)),
        pl.BlockSpec((k0, hw_f), lambda i: (0, 0)),
    ]
    for (wt, b, s), m in zip(layers, metas):
        ktot = m['k'] * m['k'] * m['cin']
        # (Cout, Cin, KH, KW) -> (Cout, KH, KW, Cin) -> (Cout, KH*KW*Cin); matches
        # im2col row order (dh, dw, ci).  Also the conversion needed for real
        # PyTorch Conv2d weights.
        w_mat = jnp.transpose(wt, (0, 2, 3, 1)).reshape(m['cout'], ktot)
        operands += [w_mat, b.reshape(m['cout'], 1)]
        in_specs += [pl.BlockSpec((m['cout'], ktot), lambda i: (0, 0)),
                     pl.BlockSpec((m['cout'], 1), lambda i: (0, 0))]

    flops = 2 * n * sum(m['h_out'] * m['w_out'] * m['k'] * m['k'] * m['cin'] * m['cout']
                        for m in metas)
    bytes_accessed = 4 * (x_flat.size + wmask.size + n * cout_last * hw_last
                          + sum(m['cout'] * (m['k'] * m['k'] * m['cin'] + 1)
                                for m in metas))

    out_flat = pl.pallas_call(
        functools.partial(_vgg_block_kernel, layer_meta=tuple(metas)),
        out_shape=jax.ShapeDtypeStruct((n, cout_last, hw_last), x_nchw.dtype),
        grid=(n,),
        in_specs=in_specs,
        out_specs=pl.BlockSpec((1, cout_last, hw_last), lambda i: (i, 0, 0)),
        compiler_params=pltpu.CompilerParams(dimension_semantics=("parallel",)),
        cost_estimate=pl.CostEstimate(flops=flops, transcendentals=0,
                                      bytes_accessed=bytes_accessed),
    )(*operands)
    return out_flat.reshape(n, cout_last, h_last, w_last)


class VGGBlockPallas:
    """JAX/Pallas equivalent of the PyTorch VGGBlock module (bn=False, relu)."""

    def __init__(self, in_channel, channel, n_layers, kernel_size=3, stride=1,
                 bn=False, activation='relu', *, key):
        # TODO(synk): bn=True (BatchNorm) path not implemented; default bn=False is used.
        assert not bn, "BatchNorm path not implemented"
        assert activation == 'relu', "only relu activation implemented"
        self.channel = channel
        self.layers = []
        strides = [stride] + [1] * (n_layers - 1)
        keys = jax.random.split(key, n_layers)
        cin = in_channel
        for k, s in zip(keys, strides):
            fan_in = cin * kernel_size * kernel_size
            # PyTorch OIHW layout, kaiming-like init; deterministic small bias.
            w = jax.random.normal(k, (channel, cin, kernel_size, kernel_size),
                                  dtype=jnp.float32) * (2.0 / fan_in) ** 0.5
            b = jnp.full((channel,), 0.01, dtype=jnp.float32)
            self.layers.append((w, b, s))
            cin = channel

    def __call__(self, x_nchw):
        return vgg_block_forward(x_nchw, self.layers)


if __name__ == "__main__":
    key = jax.random.PRNGKey(0)
    k_x, k_p = jax.random.split(key)

    # Small shapes consistent with the module: batch=2, in_channel=4, spatial=16x16.
    x = jax.random.normal(k_x, (2, 4, 16, 16), dtype=jnp.float32)   # NCHW (PyTorch layout)

    block = VGGBlockPallas(in_channel=4, channel=8, n_layers=2,
                           kernel_size=3, stride=1, bn=False,
                           activation='relu', key=k_p)

    out = jax.block_until_ready(block(x))
    assert out.shape == (2, 8, 16, 16), out.shape

    # Cross-check against a pure-JAX reference (loose tol: MXU f32 matmul passes
    # and a different accumulation order than XLA's conv).
    ref = x
    for wt, b, s in block.layers:
        pad = wt.shape[-1] // 2
        ref = jax.lax.conv_general_dilated(
            ref, wt, (s, s), [(pad, pad), (pad, pad)],
            dimension_numbers=('NCHW', 'OIHW', 'NCHW'),
            precision=jax.lax.Precision.HIGHEST)
        ref = jnp.maximum(ref + b[None, :, None, None], 0.0)
    assert bool(jnp.allclose(out, ref, rtol=5e-2, atol=5e-2)), \
        "mismatch vs pure-JAX reference"

    print("KERNEL_OK")
</pallas_src>

<mosaic_0001>
module attributes {stable_mosaic.version = 11 : i64} {
  func.func @_vgg_block_kernel(%arg0: i32, %arg1: memref<1x4x256xf32, #tpu.memory_space<vmem>>, %arg2: memref<3x256xf32, #tpu.memory_space<vmem>>, %arg3: memref<8x36xf32, #tpu.memory_space<vmem>>, %arg4: memref<8x1xf32, #tpu.memory_space<vmem>>, %arg5: memref<8x72xf32, #tpu.memory_space<vmem>>, %arg6: memref<8x1xf32, #tpu.memory_space<vmem>>, %arg7: memref<1x8x256xf32, #tpu.memory_space<vmem>>) attributes {dimension_semantics = [#tpu.dimension_semantics<parallel>], iteration_bounds = array<i64: 2>, scalar_prefetch = 0 : i64, scratch_operands = 0 : i64, tpu.core_type = #tpu.core_type<tc>, window_params = [{transform_indices = @transform_0, window_bounds = array<i64: 1, 4, 256>}, {pipeline_mode = #tpu.pipeline_mode<synchronous>, transform_indices = @transform_1, window_bounds = array<i64: 3, 256>}, {pipeline_mode = #tpu.pipeline_mode<synchronous>, transform_indices = @transform_2, window_bounds = array<i64: 8, 36>}, {pipeline_mode = #tpu.pipeline_mode<synchronous>, transform_indices = @transform_3, window_bounds = array<i64: 8, 1>}, {pipeline_mode = #tpu.pipeline_mode<synchronous>, transform_indices = @transform_4, window_bounds = array<i64: 8, 72>}, {pipeline_mode = #tpu.pipeline_mode<synchronous>, transform_indices = @transform_5, window_bounds = array<i64: 8, 1>}, {transform_indices = @transform_6, window_bounds = array<i64: 1, 8, 256>}]} {
    %c0 = arith.constant 0 : index
    %c0_0 = arith.constant 0 : index
    %0 = vector.load %arg2[%c0, %c0_0] : memref<3x256xf32, #tpu.memory_space<vmem>>, vector<3x256xf32>
    %c0_1 = arith.constant 0 : index
    %c0_2 = arith.constant 0 : index
    %c0_3 = arith.constant 0 : index
    %1 = vector.load %arg1[%c0_1, %c0_2, %c0_3] : memref<1x4x256xf32, #tpu.memory_space<vmem>>, vector<1x4x256xf32>
    %2 = vector.shape_cast %1 : vector<1x4x256xf32> to vector<4x256xf32>
    %cst = arith.constant 0.000000e+00 : f32
    %3 = vector.broadcast %cst : f32 to vector<4x17xf32>
    %4 = tpu.concatenate %3, %2, %3 in 1 : vector<4x17xf32>, vector<4x256xf32>, vector<4x17xf32> -> vector<4x290xf32>
    %5 = vector.extract_strided_slice %4 {offsets = [0, 0], sizes = [4, 256], strides = [1, 1]} : vector<4x290xf32> to vector<4x256xf32>
    %6 = vector.extract_strided_slice %0 {offsets = [0, 0], sizes = [1, 256], strides = [1, 1]} : vector<3x256xf32> to vector<1x256xf32>
    %7 = vector.broadcast %6 : vector<1x256xf32> to vector<4x256xf32>
    %8 = arith.mulf %5, %7 : vector<4x256xf32>
    %9 = vector.extract_strided_slice %4 {offsets = [0, 1], sizes = [4, 256], strides = [1, 1]} : vector<4x290xf32> to vector<4x256xf32>
    %10 = vector.extract_strided_slice %0 {offsets = [1, 0], sizes = [1, 256], strides = [1, 1]} : vector<3x256xf32> to vector<1x256xf32>
    %11 = vector.broadcast %10 : vector<1x256xf32> to vector<4x256xf32>
    %12 = arith.mulf %9, %11 : vector<4x256xf32>
    %13 = vector.extract_strided_slice %4 {offsets = [0, 2], sizes = [4, 256], strides = [1, 1]} : vector<4x290xf32> to vector<4x256xf32>
    %14 = vector.extract_strided_slice %0 {offsets = [2, 0], sizes = [1, 256], strides = [1, 1]} : vector<3x256xf32> to vector<1x256xf32>
    %15 = vector.broadcast %14 : vector<1x256xf32> to vector<4x256xf32>
    %16 = arith.mulf %13, %15 : vector<4x256xf32>
    %17 = vector.extract_strided_slice %4 {offsets = [0, 16], sizes = [4, 256], strides = [1, 1]} : vector<4x290xf32> to vector<4x256xf32>
    %18 = vector.extract_strided_slice %0 {offsets = [0, 0], sizes = [1, 256], strides = [1, 1]} : vector<3x256xf32> to vector<1x256xf32>
    %19 = vector.broadcast %18 : vector<1x256xf32> to vector<4x256xf32>
    %20 = arith.mulf %17, %19 : vector<4x256xf32>
    %21 = vector.extract_strided_slice %4 {offsets = [0, 17], sizes = [4, 256], strides = [1, 1]} : vector<4x290xf32> to vector<4x256xf32>
    %22 = vector.extract_strided_slice %0 {offsets = [1, 0], sizes = [1, 256], strides = [1, 1]} : vector<3x256xf32> to vector<1x256xf32>
    %23 = vector.broadcast %22 : vector<1x256xf32> to vector<4x256xf32>
    %24 = arith.mulf %21, %23 : vector<4x256xf32>
    %25 = vector.extract_strided_slice %4 {offsets = [0, 18], sizes = [4, 256], strides = [1, 1]} : vector<4x290xf32> to vector<4x256xf32>
    %26 = vector.extract_strided_slice %0 {offsets = [2, 0], sizes = [1, 256], strides = [1, 1]} : vector<3x256xf32> to vector<1x256xf32>
    %27 = vector.broadcast %26 : vector<1x256xf32> to vector<4x256xf32>
    %28 = arith.mulf %25, %27 : vector<4x256xf32>
    %29 = vector.extract_strided_slice %4 {offsets = [0, 32], sizes = [4, 256], strides = [1, 1]} : vector<4x290xf32> to vector<4x256xf32>
    %30 = vector.extract_strided_slice %0 {offsets = [0, 0], sizes = [1, 256], strides = [1, 1]} : vector<3x256xf32> to vector<1x256xf32>
    %31 = vector.broadcast %30 : vector<1x256xf32> to vector<4x256xf32>
    %32 = arith.mulf %29, %31 : vector<4x256xf32>
    %33 = vector.extract_strided_slice %4 {offsets = [0, 33], sizes = [4, 256], strides = [1, 1]} : vector<4x290xf32> to vector<4x256xf32>
    %34 = vector.extract_strided_slice %0 {offsets = [1, 0], sizes = [1, 256], strides = [1, 1]} : vector<3x256xf32> to vector<1x256xf32>
    %35 = vector.broadcast %34 : vector<1x256xf32> to vector<4x256xf32>
    %36 = arith.mulf %33, %35 : vector<4x256xf32>
    %37 = vector.extract_strided_slice %4 {offsets = [0, 34], sizes = [4, 256], strides = [1, 1]} : vector<4x290xf32> to vector<4x256xf32>
    %38 = vector.extract_strided_slice %0 {offsets = [2, 0], sizes = [1, 256], strides = [1, 1]} : vector<3x256xf32> to vector<1x256xf32>
    %39 = vector.broadcast %38 : vector<1x256xf32> to vector<4x256xf32>
    %40 = arith.mulf %37, %39 : vector<4x256xf32>
    %41 = tpu.concatenate %8, %12, %16, %20, %24, %28, %32, %36, %40 in 0 : vector<4x256xf32>, vector<4x256xf32>, vector<4x256xf32>, vector<4x256xf32>, vector<4x256xf32>, vector<4x256xf32>, vector<4x256xf32>, vector<4x256xf32>, vector<4x256xf32> -> vector<36x256xf32>
    %c0_4 = arith.constant 0 : index
    %c0_5 = arith.constant 0 : index
    %42 = vector.load %arg3[%c0_4, %c0_5] : memref<8x36xf32, #tpu.memory_space<vmem>>, vector<8x36xf32>
    %cst_6 = arith.constant dense<0.000000e+00> : vector<8x256xf32>
    %43 = tpu.matmul %42, %41, %cst_6 {dimension_numbers = #tpu.dot_dimension_numbers<[1], [0], [0], [1], [0, 0, 1, 1], [], []>} : vector<8x36xf32>, vector<36x256xf32>, vector<8x256xf32> -> vector<8x256xf32>
    %c0_7 = arith.constant 0 : index
    %c0_8 = arith.constant 0 : index
    %44 = vector.load %arg4[%c0_7, %c0_8] : memref<8x1xf32, #tpu.memory_space<vmem>>, vector<8x1xf32>
    %45 = vector.broadcast %44 : vector<8x1xf32> to vector<8x256xf32>
    %46 = arith.addf %43, %45 : vector<8x256xf32>
    %cst_9 = arith.constant 0.000000e+00 : f32
    %47 = vector.broadcast %cst_9 : f32 to vector<8x256xf32>
    %48 = arith.maximumf %46, %47 : vector<8x256xf32>
    %cst_10 = arith.constant 0.000000e+00 : f32
    %49 = vector.broadcast %cst_10 : f32 to vector<8x17xf32>
    %50 = tpu.concatenate %49, %48, %49 in 1 : vector<8x17xf32>, vector<8x256xf32>, vector<8x17xf32> -> vector<8x290xf32>
    %51 = vector.extract_strided_slice %50 {offsets = [0, 0], sizes = [8, 256], strides = [1, 1]} : vector<8x290xf32> to vector<8x256xf32>
    %52 = vector.extract_strided_slice %0 {offsets = [0, 0], sizes = [1, 256], strides = [1, 1]} : vector<3x256xf32> to vector<1x256xf32>
    %53 = vector.broadcast %52 : vector<1x256xf32> to vector<8x256xf32>
    %54 = arith.mulf %51, %53 : vector<8x256xf32>
    %55 = vector.extract_strided_slice %50 {offsets = [0, 1], sizes = [8, 256], strides = [1, 1]} : vector<8x290xf32> to vector<8x256xf32>
    %56 = vector.extract_strided_slice %0 {offsets = [1, 0], sizes = [1, 256], strides = [1, 1]} : vector<3x256xf32> to vector<1x256xf32>
    %57 = vector.broadcast %56 : vector<1x256xf32> to vector<8x256xf32>
    %58 = arith.mulf %55, %57 : vector<8x256xf32>
    %59 = vector.extract_strided_slice %50 {offsets = [0, 2], sizes = [8, 256], strides = [1, 1]} : vector<8x290xf32> to vector<8x256xf32>
    %60 = vector.extract_strided_slice %0 {offsets = [2, 0], sizes = [1, 256], strides = [1, 1]} : vector<3x256xf32> to vector<1x256xf32>
    %61 = vector.broadcast %60 : vector<1x256xf32> to vector<8x256xf32>
    %62 = arith.mulf %59, %61 : vector<8x256xf32>
    %63 = vector.extract_strided_slice %50 {offsets = [0, 16], sizes = [8, 256], strides = [1, 1]} : vector<8x290xf32> to vector<8x256xf32>
    %64 = vector.extract_strided_slice %0 {offsets = [0, 0], sizes = [1, 256], strides = [1, 1]} : vector<3x256xf32> to vector<1x256xf32>
    %65 = vector.broadcast %64 : vector<1x256xf32> to vector<8x256xf32>
    %66 = arith.mulf %63, %65 : vector<8x256xf32>
    %67 = vector.extract_strided_slice %50 {offsets = [0, 17], sizes = [8, 256], strides = [1, 1]} : vector<8x290xf32> to vector<8x256xf32>
    %68 = vector.extract_strided_slice %0 {offsets = [1, 0], sizes = [1, 256], strides = [1, 1]} : vector<3x256xf32> to vector<1x256xf32>
    %69 = vector.broadcast %68 : vector<1x256xf32> to vector<8x256xf32>
    %70 = arith.mulf %67, %69 : vector<8x256xf32>
    %71 = vector.extract_strided_slice %50 {offsets = [0, 18], sizes = [8, 256], strides = [1, 1]} : vector<8x290xf32> to vector<8x256xf32>
    %72 = vector.extract_strided_slice %0 {offsets = [2, 0], sizes = [1, 256], strides = [1, 1]} : vector<3x256xf32> to vector<1x256xf32>
    %73 = vector.broadcast %72 : vector<1x256xf32> to vector<8x256xf32>
    %74 = arith.mulf %71, %73 : vector<8x256xf32>
    %75 = vector.extract_strided_slice %50 {offsets = [0, 32], sizes = [8, 256], strides = [1, 1]} : vector<8x290xf32> to vector<8x256xf32>
    %76 = vector.extract_strided_slice %0 {offsets = [0, 0], sizes = [1, 256], strides = [1, 1]} : vector<3x256xf32> to vector<1x256xf32>
    %77 = vector.broadcast %76 : vector<1x256xf32> to vector<8x256xf32>
    %78 = arith.mulf %75, %77 : vector<8x256xf32>
    %79 = vector.extract_strided_slice %50 {offsets = [0, 33], sizes = [8, 256], strides = [1, 1]} : vector<8x290xf32> to vector<8x256xf32>
    %80 = vector.extract_strided_slice %0 {offsets = [1, 0], sizes = [1, 256], strides = [1, 1]} : vector<3x256xf32> to vector<1x256xf32>
    %81 = vector.broadcast %80 : vector<1x256xf32> to vector<8x256xf32>
    %82 = arith.mulf %79, %81 : vector<8x256xf32>
    %83 = vector.extract_strided_slice %50 {offsets = [0, 34], sizes = [8, 256], strides = [1, 1]} : vector<8x290xf32> to vector<8x256xf32>
    %84 = vector.extract_strided_slice %0 {offsets = [2, 0], sizes = [1, 256], strides = [1, 1]} : vector<3x256xf32> to vector<1x256xf32>
    %85 = vector.broadcast %84 : vector<1x256xf32> to vector<8x256xf32>
    %86 = arith.mulf %83, %85 : vector<8x256xf32>
    %87 = tpu.concatenate %54, %58, %62, %66, %70, %74, %78, %82, %86 in 0 : vector<8x256xf32>, vector<8x256xf32>, vector<8x256xf32>, vector<8x256xf32>, vector<8x256xf32>, vector<8x256xf32>, vector<8x256xf32>, vector<8x256xf32>, vector<8x256xf32> -> vector<72x256xf32>
    %c0_11 = arith.constant 0 : index
    %c0_12 = arith.constant 0 : index
    %88 = vector.load %arg5[%c0_11, %c0_12] : memref<8x72xf32, #tpu.memory_space<vmem>>, vector<8x72xf32>
    %cst_13 = arith.constant dense<0.000000e+00> : vector<8x256xf32>
    %89 = tpu.matmul %88, %87, %cst_13 {dimension_numbers = #tpu.dot_dimension_numbers<[1], [0], [0], [1], [0, 0, 1, 1], [], []>} : vector<8x72xf32>, vector<72x256xf32>, vector<8x256xf32> -> vector<8x256xf32>
    %c0_14 = arith.constant 0 : index
    %c0_15 = arith.constant 0 : index
    %90 = vector.load %arg6[%c0_14, %c0_15] : memref<8x1xf32, #tpu.memory_space<vmem>>, vector<8x1xf32>
    %91 = vector.broadcast %90 : vector<8x1xf32> to vector<8x256xf32>
    %92 = arith.addf %89, %91 : vector<8x256xf32>
    %cst_16 = arith.constant 0.000000e+00 : f32
    %93 = vector.broadcast %cst_16 : f32 to vector<8x256xf32>
    %94 = arith.maximumf %92, %93 : vector<8x256xf32>
    %c0_17 = arith.constant 0 : index
    %c0_18 = arith.constant 0 : index
    %c0_19 = arith.constant 0 : index
    %95 = vector.load %arg7[%c0_17, %c0_18, %c0_19] : memref<1x8x256xf32, #tpu.memory_space<vmem>>, vector<1x8x256xf32>
    %96 = vector.shape_cast %95 : vector<1x8x256xf32> to vector<8x256xf32>
    %97 = vector.shape_cast %94 : vector<8x256xf32> to vector<1x8x256xf32>
    tpu.vector_store %arg7[%c0_17, %c0_18, %c0_19], %97 {strides = array<i32>} : memref<1x8x256xf32, #tpu.memory_space<vmem>>, vector<1x8x256xf32>,
    return
  }
  func.func @transform_0(%arg0: i32) -> (i32, i32, i32) {
    %c0_i32 = arith.constant 0 : i32
    %c0_i32_0 = arith.constant 0 : i32
    %c0_i32_1 = arith.constant 0 : i32
    return %arg0, %c0_i32, %c0_i32_0 : i32, i32, i32
  }
  func.func @transform_1(%arg0: i32) -> (i32, i32) {
    %c0_i32 = arith.constant 0 : i32
    %c0_i32_0 = arith.constant 0 : i32
    %c0_i32_1 = arith.constant 0 : i32
    return %c0_i32, %c0_i32_0 : i32, i32
  }
  func.func @transform_2(%arg0: i32) -> (i32, i32) {
    %c0_i32 = arith.constant 0 : i32
    %c0_i32_0 = arith.constant 0 : i32
    %c0_i32_1 = arith.constant 0 : i32
    return %c0_i32, %c0_i32_0 : i32, i32
  }
  func.func @transform_3(%arg0: i32) -> (i32, i32) {
    %c0_i32 = arith.constant 0 : i32
    %c0_i32_0 = arith.constant 0 : i32
    %c0_i32_1 = arith.constant 0 : i32
    return %c0_i32, %c0_i32_0 : i32, i32
  }
  func.func @transform_4(%arg0: i32) -> (i32, i32) {
    %c0_i32 = arith.constant 0 : i32
    %c0_i32_0 = arith.constant 0 : i32
    %c0_i32_1 = arith.constant 0 : i32
    return %c0_i32, %c0_i32_0 : i32, i32
  }
  func.func @transform_5(%arg0: i32) -> (i32, i32) {
    %c0_i32 = arith.constant 0 : i32
    %c0_i32_0 = arith.constant 0 : i32
    %c0_i32_1 = arith.constant 0 : i32
    return %c0_i32, %c0_i32_0 : i32, i32
  }
  func.func @transform_6(%arg0: i32) -> (i32, i32, i32) {
    %c0_i32 = arith.constant 0 : i32
    %c0_i32_0 = arith.constant 0 : i32
    %c0_i32_1 = arith.constant 0 : i32
    return %arg0, %c0_i32, %c0_i32_0 : i32, i32, i32
  }
}

</mosaic_0001>

<llo_original>
// kernel: tpu_custom_call.1
$region0: #{tpu_custom_call.1}
  #allocation0 [shape = 'u32[]', space=smem, size = 0x4, offset = 0x4, fixed_abs, tag = 'smem constant byte address 0x4 - core index']
  #allocation1 [shape = 'u32[144,128]{1,0:T(1,128)}', space=vmem, size = 0x12000, scoped, tag = 'internal scratch']
  %s0 = inlined_call_operand.vmem [shape: f32[2,4,256], index: 0, kind: input, shape index: {}]
  %s1 = inlined_call_operand.hbm [shape: f32[3,256], index: 1, kind: input, shape index: {}]
  %s2 = inlined_call_operand.vmem [shape: f32[8,36], index: 2, kind: input, shape index: {}]
  %s3 = inlined_call_operand.vmem [shape: f32[8,1], index: 3, kind: input, shape index: {}]
  %s4 = inlined_call_operand.vmem [shape: f32[8,72], index: 4, kind: input, shape index: {}]
  %s5 = inlined_call_operand.vmem [shape: f32[8,1], index: 5, kind: input, shape index: {}]
  %s6 = inlined_call_operand.hbm [shape: f32[2,8,256], index: 6, kind: output, shape index: {}]
  %s7 = sld [smem:[#allocation0]]
  $region61: #{tpu_custom_call.1} parent=0
    _
  %s9 = ssub.s32 1, %s7
  %s10 = scalar_select 0, %s9, %s7
  $region1: #{tpu_custom_call.1} parent=0
    #allocation2 [shape = 'u8[4096]{0}', space=vmem, size = 0x1000, scoped, tag = 'input window, operand 1, single buffered']
    #allocation3 [shape = 's32[2]{0}', space=sflag, size = 0x8, scoped, tag = 'scoped memory for tpu_custom_call.1']
    #allocation4 [shape = 's32[2]{0}', space=sflag, size = 0x8, scoped, tag = 'scoped memory for tpu_custom_call.1']
    #allocation5 [shape = 'u8[16384]{0}', space=vmem, size = 0x4000, scoped, tag = 'output window, operand 0']
    %11 = vsyncpa [#allocation3], 0
    %12 = vsyncpa [#allocation4], 0
    %s13 = scalar_lea.sflag [#allocation4], 1
    %14 = vsyncpa %s13, 0
    loop: start=0, step=1, limit=4
    $region2: #{tpu_custom_call.1} parent=1 // loop_pre_header
      _
    $region3: #{tpu_custom_call.1} parent=1 // loop_header
      %s16 = sphi 0, %s20
      %p17 = scmp.ge.s32.totalorder %s16, 4
      %s26 = sphi 0, %s28
      %s29 = sphi 0, %s26
      %s30 = sphi 0, %s29
      %s46 = sphi 0, %s30
      %s50 = sphi 0, %s50
      %s52 = sphi 0, %s50
      %s53 = sphi 0, %s52
      %s67 = sphi 0, %s53
      %s71 = sphi 0, %s71
      %s73 = sphi 0, %s71
      %s74 = sphi 0, %s73
      %s88 = sphi 0, %s74
      %s92 = sphi 0, %s92
      %s94 = sphi 0, %s92
      %s95 = sphi 0, %s94
      %s109 = sphi 0, %s95
      %s113 = sphi 0, %s113
      %s115 = sphi 0, %s113
      %s116 = sphi 0, %s115
      %s130 = sphi 0, %s116
      %s134 = sphi 0, %s134
      %s136 = sphi 0, %s134
      %s137 = sphi 0, %s136
      %s151 = sphi 0, %s137
      %s157 = sphi 0, %s159
      %s160 = sphi 0, %s157
      %s161 = sphi 0, %s160
      %s177 = sphi 0, %s161
    $region4: #{tpu_custom_call.1} parent=1 // loop_header_branch
      %19 = sbr.rel (%p17) target = $region8
    $region5: #{tpu_custom_call.1} parent=1 // loop_body
      %s21 = ssub.s32 %s16, 1
      %s22 = ssub.s32 %s16, 2
      %s23 = sadd.s32 %s16, 1
      %s24 = ssub.s32 %s16, %s23
      %p25 = scmp.eq.s32.totalorder %s24, 0
      %s27 = sadd.s32 %s26, 1
      %s28 = scalar_select %p25, %s26, %s27
      %p31 = pneg %p25
      %p32 = scmp.eq.s32.totalorder %s16, 1
      %p33 = por %p31, %p32
      %p34 = scmp.ne.s32.totalorder %s26, %s29
      %p35 = scmp.eq.s32.totalorder %s16, 0
      %p36 = por %p34, %p35
      %p37 = scmp.ne.s32.totalorder %s26, %s29
      %p38 = scmp.eq.s32.totalorder %s21, 1
      %p39 = por %p37, %p38
      %p40 = scmp.ne.s32.totalorder %s29, %s30
      %p41 = scmp.eq.s32.totalorder %s21, 0
      %p42 = por %p40, %p41
      %p43 = scmp.ne.s32.totalorder %s29, %s30
      %p44 = scmp.eq.s32.totalorder %s22, 1
      %p45 = por %p43, %p44
      %p47 = scmp.ne.s32.totalorder %s30, %s46
      %p48 = scmp.eq.s32.totalorder %s22, 0
      %p49 = por %p47, %p48
      %s51 = sadd.s32 %s50, 1
      %p54 = scmp.eq.s32.totalorder %s16, 1
      %p55 = scmp.ne.s32.totalorder %s50, %s52
      %p56 = scmp.eq.s32.totalorder %s16, 0
      %p57 = por %p55, %p56
      %p58 = scmp.ne.s32.totalorder %s50, %s52
      %p59 = scmp.eq.s32.totalorder %s21, 1
      %p60 = por %p58, %p59
      %p61 = scmp.ne.s32.totalorder %s52, %s53
      %p62 = scmp.eq.s32.totalorder %s21, 0
      %p63 = por %p61, %p62
      %p64 = scmp.ne.s32.totalorder %s52, %s53
      %p65 = scmp.eq.s32.totalorder %s22, 1
      %p66 = por %p64, %p65
      %p68 = scmp.ne.s32.totalorder %s53, %s67
      %p69 = scmp.eq.s32.totalorder %s22, 0
      %p70 = por %p68, %p69
      %s72 = sadd.s32 %s71, 1
      %p75 = scmp.eq.s32.totalorder %s16, 1
      %p76 = scmp.ne.s32.totalorder %s71, %s73
      %p77 = scmp.eq.s32.totalorder %s16, 0
      %p78 = por %p76, %p77
      %p79 = scmp.ne.s32.totalorder %s71, %s73
      %p80 = scmp.eq.s32.totalorder %s21, 1
      %p81 = por %p79, %p80
      %p82 = scmp.ne.s32.totalorder %s73, %s74
      %p83 = scmp.eq.s32.totalorder %s21, 0
      %p84 = por %p82, %p83
      %p85 = scmp.ne.s32.totalorder %s73, %s74
      %p86 = scmp.eq.s32.totalorder %s22, 1
      %p87 = por %p85, %p86
      %p89 = scmp.ne.s32.totalorder %s74, %s88
      %p90 = scmp.eq.s32.totalorder %s22, 0
      %p91 = por %p89, %p90
      %s93 = sadd.s32 %s92, 1
      %p96 = scmp.eq.s32.totalorder %s16, 1
      %p97 = scmp.ne.s32.totalorder %s92, %s94
      %p98 = scmp.eq.s32.totalorder %s16, 0
      %p99 = por %p97, %p98
      %p100 = scmp.ne.s32.totalorder %s92, %s94
      %p101 = scmp.eq.s32.totalorder %s21, 1
      %p102 = por %p100, %p101
      %p103 = scmp.ne.s32.totalorder %s94, %s95
      %p104 = scmp.eq.s32.totalorder %s21, 0
      %p105 = por %p103, %p104
      %p106 = scmp.ne.s32.totalorder %s94, %s95
      %p107 = scmp.eq.s32.totalorder %s22, 1
      %p108 = por %p106, %p107
      %p110 = scmp.ne.s32.totalorder %s95, %s109
      %p111 = scmp.eq.s32.totalorder %s22, 0
      %p112 = por %p110, %p111
      %s114 = sadd.s32 %s113, 1
      %p117 = scmp.eq.s32.totalorder %s16, 1
      %p118 = scmp.ne.s32.totalorder %s113, %s115
      %p119 = scmp.eq.s32.totalorder %s16, 0
      %p120 = por %p118, %p119
      %p121 = scmp.ne.s32.totalorder %s113, %s115
      %p122 = scmp.eq.s32.totalorder %s21, 1
      %p123 = por %p121, %p122
      %p124 = scmp.ne.s32.totalorder %s115, %s116
      %p125 = scmp.eq.s32.totalorder %s21, 0
      %p126 = por %p124, %p125
      %p127 = scmp.ne.s32.totalorder %s115, %s116
      %p128 = scmp.eq.s32.totalorder %s22, 1
      %p129 = por %p127, %p128
      %p131 = scmp.ne.s32.totalorder %s116, %s130
      %p132 = scmp.eq.s32.totalorder %s22, 0
      %p133 = por %p131, %p132
      %s135 = sadd.s32 %s134, 1
      %p138 = scmp.eq.s32.totalorder %s16, 1
      %p139 = scmp.ne.s32.totalorder %s134, %s136
      %p140 = scmp.eq.s32.totalorder %s16, 0
      %p141 = por %p139, %p140
      %p142 = scmp.ne.s32.totalorder %s134, %s136
      %p143 = scmp.eq.s32.totalorder %s21, 1
      %p144 = por %p142, %p143
      %p145 = scmp.ne.s32.totalorder %s136, %s137
      %p146 = scmp.eq.s32.totalorder %s21, 0
      %p147 = por %p145, %p146
      %p148 = scmp.ne.s32.totalorder %s136, %s137
      %p149 = scmp.eq.s32.totalorder %s22, 1
      %p150 = por %p148, %p149
      %p152 = scmp.ne.s32.totalorder %s137, %s151
      %p153 = scmp.eq.s32.totalorder %s22, 0
      %p154 = por %p152, %p153
      %s155 = ssub.s32 %s16, %s23
      %p156 = scmp.eq.s32.totalorder %s155, 0
      %s158 = sadd.s32 %s157, 1
      %s159 = scalar_select %p156, %s157, %s158
      %p162 = pneg %p156
      %p163 = scmp.eq.s32.totalorder %s16, 1
      %p164 = por %p162, %p163
      %p165 = scmp.ne.s32.totalorder %s157, %s160
      %p166 = scmp.eq.s32.totalorder %s16, 0
      %p167 = por %p165, %p166
      %p168 = scmp.ne.s32.totalorder %s157, %s160
      %p169 = scmp.eq.s32.totalorder %s21, 1
      %p170 = por %p168, %p169
      %p171 = scmp.ne.s32.totalorder %s160, %s161
      %p172 = scmp.eq.s32.totalorder %s21, 0
      %p173 = por %p171, %p172
      %p174 = scmp.ne.s32.totalorder %s160, %s161
      %p175 = scmp.eq.s32.totalorder %s22, 1
      %p176 = por %p174, %p175
      %p178 = scmp.ne.s32.totalorder %s161, %s177
      %p179 = scmp.eq.s32.totalorder %s22, 0
      %p180 = por %p178, %p179
      %p181 = scmp.le.s32.totalorder 1, %s16
      %p182 = scmp.lt.s32.totalorder %s16, 3
      %p183 = pnand %p181, %p182
      %p184 = pneg %p183
      // Predicated region
      $region9: #{tpu_custom_call.1} parent=5 // pred_check
        _
      $region10: #{tpu_custom_call.1} parent=5 // pred_check_branch
        %186 = sbr.rel (%p183) target = $region12
      $region11: #{tpu_custom_call.1} parent=5 // pred_region
        %s187 = ssub.s32 %s16, 1
        // Predicated region
        $region13: #{tpu_custom_call.1} parent=11 // pred_check
          %p188 = pneg %p63
        $region14: #{tpu_custom_call.1} parent=11 // pred_check_branch
          %190 = sbr.rel (%p188) target = $region16
        $region15: #{tpu_custom_call.1} parent=11 // pred_region
          %s192 = ssub.s32 128, 128
          %193 = vsyncadd [#allocation3], %s192
          %s195 = sshll.u32 [#allocation2], 4
          %s196 = int_to_ptr.vmem [resolvable:$true] %s195
          %198 = dma.hbm_to_vmem [thread:$0]  %s1, 128, %s196, [#allocation3]
        $region16: #{tpu_custom_call.1} parent=11 // pred_fallthru
          _
        // Predicated region
        $region17: #{tpu_custom_call.1} parent=11 // pred_check
          %p199 = pneg %p84
        $region18: #{tpu_custom_call.1} parent=11 // pred_check_branch
          %201 = sbr.rel (%p199) target = $region20
        $region19: #{tpu_custom_call.1} parent=11 // pred_region
          _
        $region20: #{tpu_custom_call.1} parent=11 // pred_fallthru
          _
        // Predicated region
        $region21: #{tpu_custom_call.1} parent=11 // pred_check
          %p202 = pneg %p105
        $region22: #{tpu_custom_call.1} parent=11 // pred_check_branch
          %204 = sbr.rel (%p202) target = $region24
        $region23: #{tpu_custom_call.1} parent=11 // pred_region
          _
        $region24: #{tpu_custom_call.1} parent=11 // pred_fallthru
          _
        // Predicated region
        $region25: #{tpu_custom_call.1} parent=11 // pred_check
          %p205 = pneg %p126
        $region26: #{tpu_custom_call.1} parent=11 // pred_check_branch
          %207 = sbr.rel (%p205) target = $region28
        $region27: #{tpu_custom_call.1} parent=11 // pred_region
          _
        $region28: #{tpu_custom_call.1} parent=11 // pred_fallthru
          _
        // Predicated region
        $region29: #{tpu_custom_call.1} parent=11 // pred_check
          %p208 = pneg %p147
        $region30: #{tpu_custom_call.1} parent=11 // pred_check_branch
          %210 = sbr.rel (%p208) target = $region32
        $region31: #{tpu_custom_call.1} parent=11 // pred_region
          _
        $region32: #{tpu_custom_call.1} parent=11 // pred_fallthru
          _
      $region12: #{tpu_custom_call.1} parent=5 // pred_fallthru
        _
      %p211 = scmp.lt.s32.totalorder %s16, 2
      // Predicated region
      $region33: #{tpu_custom_call.1} parent=5 // pred_check
        %p212 = pneg %p211
      $region34: #{tpu_custom_call.1} parent=5 // pred_check_branch
        %214 = sbr.rel (%p212) target = $region36
      $region35: #{tpu_custom_call.1} parent=5 // pred_region
        // Predicated region
        $region37: #{tpu_custom_call.1} parent=35 // pred_check
          %p215 = pneg %p36
        $region38: #{tpu_custom_call.1} parent=35 // pred_check_branch
          %217 = sbr.rel (%p215) target = $region40
        $region39: #{tpu_custom_call.1} parent=35 // pred_region
          %p218 = scmp.lt.s32.totalorder %s16, 1
          %s219 = scalar_select %p218, %s16, 1
          %s220 = smul.addr %s219, 2
          %s221 = smul.addr %s220, 4
          %s222 = scalar_lea.vmem %s0, %s221
        $region40: #{tpu_custom_call.1} parent=35 // pred_fallthru
          _
      $region36: #{tpu_custom_call.1} parent=5 // pred_fallthru
        _
      %p223 = scmp.le.s32.totalorder 1, %s16
      %p224 = scmp.lt.s32.totalorder %s16, 3
      %p225 = pnand %p223, %p224
      %p226 = pneg %p225
      // Predicated region
      $region41: #{tpu_custom_call.1} parent=5 // pred_check
        _
      $region42: #{tpu_custom_call.1} parent=5 // pred_check_branch
        %228 = sbr.rel (%p225) target = $region44
      $region43: #{tpu_custom_call.1} parent=5 // pred_region
        %s229 = ssub.s32 %s16, 1
        // Predicated region
        $region45: #{tpu_custom_call.1} parent=43 // pred_check
          %p230 = pneg %p63
        $region46: #{tpu_custom_call.1} parent=43 // pred_check_branch
          %232 = sbr.rel (%p230) target = $region48
        $region47: #{tpu_custom_call.1} parent=43 // pred_region
          %233 = dma.done [#allocation3], 128
        $region48: #{tpu_custom_call.1} parent=43 // pred_fallthru
          _
        %p234 = scmp.lt.s32.totalorder %s21, 1
        %s235 = scalar_select %p234, %s21, 1
        %s236 = smul.addr %s235, 2
        %s237 = smul.addr %s236, 4
        %s238 = scalar_lea.vmem %s0, %s237
        %p239 = pneg %p42
        %p240 = pneg %p39
        %p241 = pneg %p63
        %p242 = pneg %p60
        %p243 = pneg %p84
        %p244 = pneg %p81
        %p245 = pneg %p105
        %p246 = pneg %p102
        %p247 = pneg %p126
        %p248 = pneg %p123
        %p249 = pneg %p147
        %p250 = pneg %p144
        %p251 = pneg %p173
        %p252 = pneg %p170
        %s253 = sand.u32 %s160, 1
        %s254 = scalar_lea.sflag [#allocation4], %s253
        %s255 = sand.u32 %s160, 1
        %s256 = smul.addr %s255, 16
        %s257 = scalar_lea.vmem [#allocation5], %s256
        %p258 = scmp.lt.s32.totalorder %s21, 1
        %s259 = scalar_select %p258, %s21, 1
        %s260 = smul.addr %s259, 2
        %s261 = smul.addr %s260, 4
        %s262 = scalar_lea.vmem %s0, %s261
        %v263 = vld [vmem:[#allocation2] sm:$0x77]
        %v264 = vld [vmem:[%s262] sm:$0xff]
        %v266 = vcombine.high %v264, %v264
        %267 = vrot.lane.b32.xlu0 %v264, 17
        %v268 = vpop.permute.xlu0 %267
        %269 = vrot.lane.b32.xlu0 %v266, 17
        %v270 = vpop.permute.xlu0 %269
        %vm271 = vcmask 138240
        %v272 = vsel %vm271, %v268, %v270
        %v276 = vsel %vm271, 0.0, %v268
        %v277 = vsel %vm271, %v270, 0.0
        %v279 = vlaneseq
        %v280 = vshrl.u32 %v279, 7
        %v281 = vsub.s32 0, %v280
        %v282 = vrot.slane %v263, %v281
        %v283 = vlaneseq
        %v284 = vshrl.u32 %v283, 7
        %v285 = vsub.s32 4, %v284
        %v286 = vrot.slane %v263, %v285
        %v289 = vlaneseq
        %v290 = vshrl.u32 %v289, 7
        %v291 = vsub.s32 0, %v290
        %v292 = vrot.slane %v282, %v291
        %v293 = vlaneseq
        %v294 = vshrl.u32 %v293, 7
        %v295 = vsub.s32 0, %v294
        %v296 = vrot.slane %v286, %v295
        %v297 = vmul.f32 %v276, %v292
        %v298 = vmul.f32 %v272, %v296
        %v299 = vlaneseq
        %v300 = vshrl.u32 %v299, 7
        %v301 = vsub.s32 1, %v300
        %v302 = vrot.slane %v263, %v301
        %v303 = vlaneseq
        %v304 = vshrl.u32 %v303, 7
        %v305 = vsub.s32 5, %v304
        %v306 = vrot.slane %v263, %v305
        %v309 = vlaneseq
        %v310 = vshrl.u32 %v309, 7
        %v311 = vsub.s32 1, %v310
        %v312 = vrot.slane %v302, %v311
        %v313 = vlaneseq
        %v314 = vshrl.u32 %v313, 7
        %v315 = vsub.s32 1, %v314
        %v316 = vrot.slane %v306, %v315
        %319 = vrot.lane.b32.xlu0 %v312, 1
        %v320 = vpop.permute.xlu0 %319
        %321 = vrot.lane.b32.xlu0 %v316, 1
        %v322 = vpop.permute.xlu0 %321
        %vm323 = vcmask 7168
        %v324 = vsel %vm323, %v320, %v322
        %v328 = vmul.f32 %v276, %v320
        %v329 = vmul.f32 %v272, %v324
        %v330 = vmul.f32 %v277, %v322
        %v331 = vlaneseq
        %v332 = vshrl.u32 %v331, 7
        %v333 = vsub.s32 2, %v332
        %v334 = vrot.slane %v263, %v333
        %v335 = vlaneseq
        %v336 = vshrl.u32 %v335, 7
        %v337 = vsub.s32 6, %v336
        %v338 = vrot.slane %v263, %v337
        %v341 = vlaneseq
        %v342 = vshrl.u32 %v341, 7
        %v343 = vsub.s32 2, %v342
        %v344 = vrot.slane %v334, %v343
        %v345 = vlaneseq
        %v346 = vshrl.u32 %v345, 7
        %v347 = vsub.s32 2, %v346
        %v348 = vrot.slane %v338, %v347
        %351 = vrot.lane.b32.xlu0 %v344, 2
        %v352 = vpop.permute.xlu0 %351
        %353 = vrot.lane.b32.xlu0 %v348, 2
        %v354 = vpop.permute.xlu0 %353
        %vm355 = vcmask 15360
        %v356 = vsel %vm355, %v352, %v354
        %v360 = vmul.f32 %v276, %v352
        %v361 = vmul.f32 %v272, %v356
        %v362 = vmul.f32 %v277, %v354
        %365 = vrot.lane.b32.xlu0 %v292, 16
        %v366 = vpop.permute.xlu0 %365
        %367 = vrot.lane.b32.xlu0 %v296, 16
        %v368 = vpop.permute.xlu0 %367
        %vm369 = vcmask 130048
        %v370 = vsel %vm369, %v366, %v368
        %v374 = vmul.f32 %v276, %v366
        %v375 = vmul.f32 %v272, %v370
        %v376 = vmul.f32 %v277, %v368
        %377 = vrot.lane.b32.xlu0 %v312, 17
        %v378 = vpop.permute.xlu0 %377
        %379 = vrot.lane.b32.xlu0 %v316, 17
        %v380 = vpop.permute.xlu0 %379
        %v381 = vsel %vm271, %v378, %v380
        %v385 = vmul.f32 %v276, %v378
        %v386 = vmul.f32 %v272, %v381
        %v387 = vmul.f32 %v277, %v380
        %388 = vrot.lane.b32.xlu0 %v344, 18
        %v389 = vpop.permute.xlu0 %388
        %390 = vrot.lane.b32.xlu0 %v348, 18
        %v391 = vpop.permute.xlu0 %390
        %vm392 = vcmask 146432
        %v393 = vsel %vm392, %v389, %v391
        %v397 = vmul.f32 %v276, %v389
        %v398 = vmul.f32 %v272, %v393
        %v399 = vmul.f32 %v277, %v391
        %400 = vrot.lane.b32.xlu0 %v292, 32
        %v401 = vpop.permute.xlu0 %400
        %402 = vrot.lane.b32.xlu0 %v296, 32
        %v403 = vpop.permute.xlu0 %402
        %vm404 = vcmask 261120
        %v405 = vsel %vm404, %v401, %v403
        %v409 = vmul.f32 %v276, %v401
        %v410 = vmul.f32 %v272, %v405
        %v411 = vmul.f32 %v277, %v403
        %412 = vrot.lane.b32.xlu0 %v312, 33
        %v413 = vpop.permute.xlu0 %412
        %414 = vrot.lane.b32.xlu0 %v316, 33
        %v415 = vpop.permute.xlu0 %414
        %vm416 = vcmask 269312
        %v417 = vsel %vm416, %v413, %v415
        %v421 = vmul.f32 %v276, %v413
        %v422 = vmul.f32 %v272, %v417
        %v423 = vmul.f32 %v277, %v415
        %424 = vrot.lane.b32.xlu0 %v344, 34
        %v425 = vpop.permute.xlu0 %424
        %426 = vrot.lane.b32.xlu0 %v348, 34
        %v427 = vpop.permute.xlu0 %426
        %vm428 = vcmask 277504
        %v429 = vsel %vm428, %v425, %v427
        %v433 = vmul.f32 %v276, %v425
        %v434 = vmul.f32 %v272, %v429
        %v435 = vmul.f32 %v277, %v427
        %v439 = vrot.slane %v328, 4
        %v440 = vrot.slane %v329, 4
        %v441 = vrot.slane %v330, 4
        %442 = vrot.lane.b32.xlu0 %v439, 127
        %v443 = vpop.permute.xlu0 %442
        %444 = vrot.lane.b32.xlu0 %v440, 127
        %v445 = vpop.permute.xlu0 %444
        %446 = vrot.lane.b32.xlu0 %v441, 127
        %v447 = vpop.permute.xlu0 %446
        %vm448 = vcmask 1039360
        %v449 = vsel %vm448, %v443, %v445
        %v450 = vsel %vm448, %v445, %v447
        %456 = vrot.lane.b32.xlu0 %v360, 126
        %v457 = vpop.permute.xlu0 %456
        %458 = vrot.lane.b32.xlu0 %v361, 126
        %v459 = vpop.permute.xlu0 %458
        %460 = vrot.lane.b32.xlu0 %v362, 126
        %v461 = vpop.permute.xlu0 %460
        %vm462 = vcmask 1031168
        %v463 = vsel %vm462, %v457, %v459
        %v464 = vsel %vm462, %v459, %v461
        %v470 = vrot.slane %v374, 4
        %v471 = vrot.slane %v375, 4
        %v472 = vrot.slane %v376, 4
        %473 = vrot.lane.b32.xlu0 %v470, 112
        %v474 = vpop.permute.xlu0 %473
        %475 = vrot.lane.b32.xlu0 %v471, 112
        %v476 = vpop.permute.xlu0 %475
        %477 = vrot.lane.b32.xlu0 %v472, 112
        %v478 = vpop.permute.xlu0 %477
        %vm479 = vcmask 916480
        %v480 = vsel %vm479, %v474, %v476
        %v481 = vsel %vm479, %v476, %v478
        %487 = vrot.lane.b32.xlu0 %v385, 111
        %v488 = vpop.permute.xlu0 %487
        %489 = vrot.lane.b32.xlu0 %v386, 111
        %v490 = vpop.permute.xlu0 %489
        %491 = vrot.lane.b32.xlu0 %v387, 111
        %v492 = vpop.permute.xlu0 %491
        %vm493 = vcmask 908288
        %v494 = vsel %vm493, %v488, %v490
        %v495 = vsel %vm493, %v490, %v492
        %v501 = vrot.slane %v397, 4
        %v502 = vrot.slane %v398, 4
        %v503 = vrot.slane %v399, 4
        %504 = vrot.lane.b32.xlu0 %v501, 110
        %v505 = vpop.permute.xlu0 %504
        %506 = vrot.lane.b32.xlu0 %v502, 110
        %v507 = vpop.permute.xlu0 %506
        %508 = vrot.lane.b32.xlu0 %v503, 110
        %v509 = vpop.permute.xlu0 %508
        %vm510 = vcmask 900096
        %v511 = vsel %vm510, %v505, %v507
        %v512 = vsel %vm510, %v507, %v509
        %518 = vrot.lane.b32.xlu0 %v409, 96
        %v519 = vpop.permute.xlu0 %518
        %520 = vrot.lane.b32.xlu0 %v410, 96
        %v521 = vpop.permute.xlu0 %520
        %522 = vrot.lane.b32.xlu0 %v411, 96
        %v523 = vpop.permute.xlu0 %522
        %vm524 = vcmask 785408
        %v525 = vsel %vm524, %v519, %v521
        %v526 = vsel %vm524, %v521, %v523
        %v532 = vrot.slane %v421, 4
        %v533 = vrot.slane %v422, 4
        %v534 = vrot.slane %v423, 4
        %535 = vrot.lane.b32.xlu0 %v532, 95
        %v536 = vpop.permute.xlu0 %535
        %537 = vrot.lane.b32.xlu0 %v533, 95
        %v538 = vpop.permute.xlu0 %537
        %539 = vrot.lane.b32.xlu0 %v534, 95
        %v540 = vpop.permute.xlu0 %539
        %vm541 = vcmask 777216
        %v542 = vsel %vm541, %v536, %v538
        %v543 = vsel %vm541, %v538, %v540
        %549 = vrot.lane.b32.xlu0 %v433, 94
        %v550 = vpop.permute.xlu0 %549
        %551 = vrot.lane.b32.xlu0 %v434, 94
        %v552 = vpop.permute.xlu0 %551
        %553 = vrot.lane.b32.xlu0 %v435, 94
        %v554 = vpop.permute.xlu0 %553
        %vm555 = vcmask 769024
        %v556 = vsel %vm555, %v550, %v552
        %v557 = vsel %vm555, %v552, %v554
        %vm558 = vcmask 1043456
        %v559 = vsel %vm558, %v297, %v449
        %v560 = vsel %vm558, %v298, %v450
        %v561 = vsel %vm558, %v463, %v480
        %v562 = vsel %vm558, %v464, %v481
        %v563 = vsel %vm558, %v494, %v511
        %v564 = vsel %vm558, %v495, %v512
        %v565 = vsel %vm558, %v525, %v542
        %v566 = vsel %vm558, %v526, %v543
        %v567 = vld [vmem:[%s2] sm:$0xff]
        %v568 = vld [vmem:[%s3] sm:$0xff]
        %570 = vset.pattern.permute.xlu0 0
        %571 = vperm.xlu0 %570, %v568
        %v572 = vpop.permute.xlu0 %571
        %vm574 = vcmask 293888
        %v576 = vsel %vm574, %v567, 0
        %v578 = vsel %vm558, %v556, 0
        %v580 = vsel %vm558, %v557, 0
        %582 = vmatprep.subr.mxu0 %v560
        %583 = vmatpush1.msra.mxu0 %v559
        %584 = vmatprep.subr.mxu0 %v562
        %585 = vmatpush1.msra.mxu0 %v561
        %586 = vmatprep.subr.mxu0 %v564
        %587 = vmatpush1.msra.mxu0 %v563
        %588 = vmatprep.subr.mxu0 %v566
        %589 = vmatpush1.msra.mxu0 %v565
        %590 = vmatprep.subr.mxu0 %v580
        %591 = vmatpush1.msra.mxu0 %v578
        %592 = vmatprep.subr.mxu0 0.0
        %593 = vmatpush1.msra.mxu0 0.0
        %594 = vmatprep.subr.mxu0 0.0
        %595 = vmatpush1.msra.mxu0 0.0
        %596 = vmatprep.subr.mxu0 0.0
        %597 = vmatpush1.msra.mxu0 0.0
        %598 = vmatprep.subr.mxu0 0.0
        %599 = vmatpush1.msra.mxu0 0.0
        %600 = vmatprep.subr.mxu0 0.0
        %601 = vmatpush1.msra.mxu0 0.0
        %602 = vmatprep.subr.mxu0 0.0
        %603 = vmatpush1.msra.mxu0 0.0
        %604 = vmatprep.subr.mxu0 0.0
        %605 = vmatpush1.msra.mxu0 0.0
        %606 = vmatprep.subr.mxu0 0.0
        %607 = vmatpush1.msra.mxu0 0.0
        %608 = vmatprep.subr.mxu0 0.0
        %609 = vmatpush1.msra.mxu0 0.0
        %610 = vmatprep.subr.mxu0 0.0
        %611 = vmatpush1.msra.mxu0 0.0
        %612 = vmatprep.subr.mxu0 0.0
        %613 = vmatpush1.msra.mxu0 0.0
        %614 = vmatprep.subr.mxu0 0.0
        %615 = vmatpush1.msra.mxu0 0.0
        %616 = vmatprep.subr.mxu0 0.0
        %617 = vmatpush1.msra.mxu0 0.0
        %618 = vmatprep.subr.mxu0 0.0
        %619 = vmatpush1.msra.mxu0 0.0
        %620 = vmatprep.subr.mxu0 0.0
        %621 = vmatpush1.msra.mxu0 0.0
        %622 = vmatprep.subr.mxu0 0.0
        %623 = vmatpush1.msra.mxu0 0.0
        %624 = vmatprep.subr.mxu0 0.0
        %625 = vmatpush1.msra.mxu0 0.0
        %626 = vmatprep.subr.mxu0 0.0
        %627 = vmatpush1.msra.mxu0 0.0
        %628 = vmatprep.subr.mxu0 0.0
        %629 = vmatpush1.msra.mxu0 0.0
        %630 = vmatprep.subr.mxu0 0.0
        %631 = vmatpush1.msra.mxu0 0.0
        %632 = vmatprep.subr.mxu0 0.0
        %633 = vmatpush1.msra.mxu0 0.0
        %634 = vmatprep.subr.mxu0 0.0
        %635 = vmatpush1.msra.mxu0 0.0
        %636 = vmatprep.subr.mxu0 0.0
        %637 = vmatpush1.msra.mxu0 0.0
        %638 = vmatprep.subr.mxu0 0.0
        %639 = vmatpush1.msra.mxu0 0.0
        %640 = vmatprep.subr.mxu0 0.0
        %641 = vmatpush1.msra.mxu0 0.0
        %642 = vmatprep.subr.mxu0 0.0
        %643 = vmatpush1.msra.mxu0 0.0
        %644 = vmatprep.subr.mxu0 0.0
        %645 = vmatpush1.msra.mxu0 0.0
        %646 = vmatprep.mubr.f32.mxu0 0.0
        %647 = vmatmul.mubr.f32.gmra.mrb[0].mxu0 %v576
        %v648 = vpop.f32.mrb[0].mxu0
        %v649 = vadd.f32 %v572, %v648
        %v650 = vpop.f32.mrb[0].mxu0
        %v651 = vadd.f32 %v572, %v650
        %652 = vdwg.mxu0
        %v653 = vmax.f32 %v649, 0.0
        %v654 = vmax.f32 %v651, 0.0
        %657 = vrot.lane.b32.xlu0 %v653, 17
        %v658 = vpop.permute.xlu0 %657
        %659 = vrot.lane.b32.xlu0 %v654, 17
        %v660 = vpop.permute.xlu0 %659
        %v661 = vsel %vm271, %v658, %v660
        %v665 = vsel %vm271, 0.0, %v658
        %v666 = vsel %vm271, %v660, 0.0
        %v667 = vmul.f32 %v665, %v292
        %v668 = vmul.f32 %v661, %v296
        %v669 = vmul.f32 %v665, %v320
        %v670 = vmul.f32 %v661, %v324
        %v671 = vmul.f32 %v666, %v322
        %v672 = vmul.f32 %v665, %v352
        %v673 = vmul.f32 %v661, %v356
        %v674 = vmul.f32 %v666, %v354
        %v675 = vmul.f32 %v665, %v366
        %v676 = vmul.f32 %v661, %v370
        %v677 = vmul.f32 %v666, %v368
        %v678 = vmul.f32 %v665, %v378
        %v679 = vmul.f32 %v661, %v381
        %v680 = vmul.f32 %v666, %v380
        %v681 = vmul.f32 %v665, %v389
        %v682 = vmul.f32 %v661, %v393
        %v683 = vmul.f32 %v666, %v391
        %v684 = vmul.f32 %v665, %v401
        %v685 = vmul.f32 %v661, %v405
        %v686 = vmul.f32 %v666, %v403
        %v687 = vmul.f32 %v665, %v413
        %v688 = vmul.f32 %v661, %v417
        %v689 = vmul.f32 %v666, %v415
        %v690 = vmul.f32 %v665, %v425
        %v691 = vmul.f32 %v661, %v429
        %v692 = vmul.f32 %v666, %v427
        %696 = vrot.lane.b32.xlu0 %v669, 127
        %v697 = vpop.permute.xlu0 %696
        %698 = vrot.lane.b32.xlu0 %v670, 127
        %v699 = vpop.permute.xlu0 %698
        %700 = vrot.lane.b32.xlu0 %v671, 127
        %v701 = vpop.permute.xlu0 %700
        %v702 = vsel %vm448, %v697, %v699
        %v703 = vsel %vm448, %v699, %v701
        %709 = vrot.lane.b32.xlu0 %v672, 126
        %v710 = vpop.permute.xlu0 %709
        %711 = vrot.lane.b32.xlu0 %v673, 126
        %v712 = vpop.permute.xlu0 %711
        %713 = vrot.lane.b32.xlu0 %v674, 126
        %v714 = vpop.permute.xlu0 %713
        %v715 = vsel %vm462, %v710, %v712
        %v716 = vsel %vm462, %v712, %v714
        %722 = vrot.lane.b32.xlu0 %v675, 112
        %v723 = vpop.permute.xlu0 %722
        %724 = vrot.lane.b32.xlu0 %v676, 112
        %v725 = vpop.permute.xlu0 %724
        %726 = vrot.lane.b32.xlu0 %v677, 112
        %v727 = vpop.permute.xlu0 %726
        %v728 = vsel %vm479, %v723, %v725
        %v729 = vsel %vm479, %v725, %v727
        %735 = vrot.lane.b32.xlu0 %v678, 111
        %v736 = vpop.permute.xlu0 %735
        %737 = vrot.lane.b32.xlu0 %v679, 111
        %v738 = vpop.permute.xlu0 %737
        %739 = vrot.lane.b32.xlu0 %v680, 111
        %v740 = vpop.permute.xlu0 %739
        %v741 = vsel %vm493, %v736, %v738
        %v742 = vsel %vm493, %v738, %v740
        %748 = vrot.lane.b32.xlu0 %v681, 110
        %v749 = vpop.permute.xlu0 %748
        %750 = vrot.lane.b32.xlu0 %v682, 110
        %v751 = vpop.permute.xlu0 %750
        %752 = vrot.lane.b32.xlu0 %v683, 110
        %v753 = vpop.permute.xlu0 %752
        %v754 = vsel %vm510, %v749, %v751
        %v755 = vsel %vm510, %v751, %v753
        %761 = vrot.lane.b32.xlu0 %v684, 96
        %v762 = vpop.permute.xlu0 %761
        %763 = vrot.lane.b32.xlu0 %v685, 96
        %v764 = vpop.permute.xlu0 %763
        %765 = vrot.lane.b32.xlu0 %v686, 96
        %v766 = vpop.permute.xlu0 %765
        %v767 = vsel %vm524, %v762, %v764
        %v768 = vsel %vm524, %v764, %v766
        %774 = vrot.lane.b32.xlu0 %v687, 95
        %v775 = vpop.permute.xlu0 %774
        %776 = vrot.lane.b32.xlu0 %v688, 95
        %v777 = vpop.permute.xlu0 %776
        %778 = vrot.lane.b32.xlu0 %v689, 95
        %v779 = vpop.permute.xlu0 %778
        %v780 = vsel %vm541, %v775, %v777
        %v781 = vsel %vm541, %v777, %v779
        %787 = vrot.lane.b32.xlu0 %v690, 94
        %v788 = vpop.permute.xlu0 %787
        %789 = vrot.lane.b32.xlu0 %v691, 94
        %v790 = vpop.permute.xlu0 %789
        %791 = vrot.lane.b32.xlu0 %v692, 94
        %v792 = vpop.permute.xlu0 %791
        %v793 = vsel %vm555, %v788, %v790
        %v794 = vsel %vm555, %v790, %v792
        %v797 = vld [vmem:[%s4] sm:$0xff]
        %v798 = vld [vmem:[%s5] sm:$0xff]
        %800 = vset.pattern.permute.xlu0 0
        %801 = vperm.xlu0 %800, %v798
        %v802 = vpop.permute.xlu0 %801
        %vm804 = vcmask 588800
        %v806 = vsel %vm804, %v797, 0
        %808 = vmatprep.subr.mxu0 %v668
        %809 = vmatpush1.msra.mxu0 %v667
        %810 = vmatprep.subr.mxu0 %v703
        %811 = vmatpush1.msra.mxu0 %v702
        %812 = vmatprep.subr.mxu0 %v716
        %813 = vmatpush1.msra.mxu0 %v715
        %814 = vmatprep.subr.mxu0 %v729
        %815 = vmatpush1.msra.mxu0 %v728
        %816 = vmatprep.subr.mxu0 %v742
        %817 = vmatpush1.msra.mxu0 %v741
        %818 = vmatprep.subr.mxu0 %v755
        %819 = vmatpush1.msra.mxu0 %v754
        %820 = vmatprep.subr.mxu0 %v768
        %821 = vmatpush1.msra.mxu0 %v767
        %822 = vmatprep.subr.mxu0 %v781
        %823 = vmatpush1.msra.mxu0 %v780
        %824 = vmatprep.subr.mxu0 %v794
        %825 = vmatpush1.msra.mxu0 %v793
        %826 = vmatprep.subr.mxu0 0.0
        %827 = vmatpush1.msra.mxu0 0.0
        %828 = vmatprep.subr.mxu0 0.0
        %829 = vmatpush1.msra.mxu0 0.0
        %830 = vmatprep.subr.mxu0 0.0
        %831 = vmatpush1.msra.mxu0 0.0
        %832 = vmatprep.subr.mxu0 0.0
        %833 = vmatpush1.msra.mxu0 0.0
        %834 = vmatprep.subr.mxu0 0.0
        %835 = vmatpush1.msra.mxu0 0.0
        %836 = vmatprep.subr.mxu0 0.0
        %837 = vmatpush1.msra.mxu0 0.0
        %838 = vmatprep.subr.mxu0 0.0
        %839 = vmatpush1.msra.mxu0 0.0
        %840 = vmatprep.subr.mxu0 0.0
        %841 = vmatpush1.msra.mxu0 0.0
        %842 = vmatprep.subr.mxu0 0.0
        %843 = vmatpush1.msra.mxu0 0.0
        %844 = vmatprep.subr.mxu0 0.0
        %845 = vmatpush1.msra.mxu0 0.0
        %846 = vmatprep.subr.mxu0 0.0
        %847 = vmatpush1.msra.mxu0 0.0
        %848 = vmatprep.subr.mxu0 0.0
        %849 = vmatpush1.msra.mxu0 0.0
        %850 = vmatprep.subr.mxu0 0.0
        %851 = vmatpush1.msra.mxu0 0.0
        %852 = vmatprep.subr.mxu0 0.0
        %853 = vmatpush1.msra.mxu0 0.0
        %854 = vmatprep.subr.mxu0 0.0
        %855 = vmatpush1.msra.mxu0 0.0
        %856 = vmatprep.subr.mxu0 0.0
        %857 = vmatpush1.msra.mxu0 0.0
        %858 = vmatprep.subr.mxu0 0.0
        %859 = vmatpush1.msra.mxu0 0.0
        %860 = vmatprep.subr.mxu0 0.0
        %861 = vmatpush1.msra.mxu0 0.0
        %862 = vmatprep.subr.mxu0 0.0
        %863 = vmatpush1.msra.mxu0 0.0
        %864 = vmatprep.subr.mxu0 0.0
        %865 = vmatpush1.msra.mxu0 0.0
        %866 = vmatprep.subr.mxu0 0.0
        %867 = vmatpush1.msra.mxu0 0.0
        %868 = vmatprep.subr.mxu0 0.0
        %869 = vmatpush1.msra.mxu0 0.0
        %870 = vmatprep.subr.mxu0 0.0
        %871 = vmatpush1.msra.mxu0 0.0
        %872 = vmatprep.mubr.f32.mxu0 0.0
        %873 = vmatmul.mubr.f32.gmra.mrb[0].mxu0 %v806
        %v874 = vpop.f32.mrb[0].mxu0
        %v875 = vadd.f32 %v802, %v874
        %v876 = vpop.f32.mrb[0].mxu0
        %v877 = vadd.f32 %v802, %v876
        %878 = vdwg.mxu0
        %v879 = vmax.f32 %v875, 0.0
        %v880 = vmax.f32 %v877, 0.0
        %881 = vst [vmem:[%s257] sm:$0xff] %v879
        %882 = vst [vmem:[%s257 + $0x8] sm:$0xff] %v880
        %s883 = sand.u32 %s160, 1
        %s884 = scalar_lea.sflag [#allocation4], %s883
        %s885 = sand.u32 %s160, 1
        %s886 = smul.addr %s885, 16
        %s887 = scalar_lea.vmem [#allocation5], %s886
        // Predicated region
        $region49: #{tpu_custom_call.1} parent=43 // pred_check
          %p888 = pneg %p170
        $region50: #{tpu_custom_call.1} parent=43 // pred_check_branch
          %890 = sbr.rel (%p888) target = $region52
        $region51: #{tpu_custom_call.1} parent=43 // pred_region
          %s892 = ssub.s32 256, 256
          %893 = vsyncadd %s884, %s892
          %s894 = smul.addr %s21, 2
          %s895 = smul.addr %s894, 128
          %s896 = scalar_lea.hbm %s6, %s895
          %s898 = sshll.u32 %s887, 4
          %s899 = int_to_ptr.vmem [resolvable:$true] %s898
          %901 = dma.vmem_to_hbm [thread:$0]  %s899, 256, %s896, %s884
        $region52: #{tpu_custom_call.1} parent=43 // pred_fallthru
          _
      $region44: #{tpu_custom_call.1} parent=5 // pred_fallthru
        _
      %p902 = scmp.le.s32.totalorder 2, %s16
      // Predicated region
      $region53: #{tpu_custom_call.1} parent=5 // pred_check
        %p903 = pneg %p902
      $region54: #{tpu_custom_call.1} parent=5 // pred_check_branch
        %905 = sbr.rel (%p903) target = $region56
      $region55: #{tpu_custom_call.1} parent=5 // pred_region
        %s906 = ssub.s32 %s16, 2
        // Predicated region
        $region57: #{tpu_custom_call.1} parent=55 // pred_check
          %p907 = pneg %p176
        $region58: #{tpu_custom_call.1} parent=55 // pred_check_branch
          %909 = sbr.rel (%p907) target = $region60
        $region59: #{tpu_custom_call.1} parent=55 // pred_region
          %s910 = sand.u32 %s161, 1
          %s911 = scalar_lea.sflag [#allocation4], %s910
          %s912 = sand.u32 %s161, 1
          %s913 = smul.addr %s912, 16
          %s914 = scalar_lea.vmem [#allocation5], %s913
          %915 = dma.done %s911, 256
        $region60: #{tpu_custom_call.1} parent=55 // pred_fallthru
          _
      $region56: #{tpu_custom_call.1} parent=5 // pred_fallthru
        _
    $region6: #{tpu_custom_call.1} parent=1 // loop_footer
      %s20 = sadd.s32 1, %s16
    $region7: #{tpu_custom_call.1} parent=1 // loop_footer_branch
      %15 = sbr.rel target = $region3
    $region8: #{tpu_custom_call.1} parent=1 // loop_exit
      _
    %916 = vsyncpa [#allocation3], 1
    %s917 = scalar_lea.sflag [#allocation3], 1
    %918 = vsyncpa %s917, 1
    %919 = vsyncpa [#allocation4], 1
    %s920 = scalar_lea.sflag [#allocation4], 1
    %921 = vsyncpa %s920, 1

</llo_original>
